<compile_context>
chip_gen: v7x
topology: tpu7x:2x2x1
jax: 0.10.0
libtpu: 0.0.40
codegen_flags: <defaults>
</compile_context>

<pallas_src>
import numpy as np
import jax
import jax.numpy as jnp
from jax import lax
from jax.experimental import pallas as pl
from jax.experimental.pallas import tpu as pltpu


def _round_up(x, m):
    return ((x + m - 1) // m) * m


# ---------------------------------------------------------------------------
# Kernel
# ---------------------------------------------------------------------------
def pca_detect_kernel(x_ref, mean_ref, comp_ref, compT_ref, inv_var_ref,
                      res_ref, t2_ref):
    # x_ref:       (TM, F) tile of samples
    # mean_ref:    (1, F)  fitted mean
    # comp_ref:    (K, F)  principal components (sklearn row convention)
    # compT_ref:   (F, K)  components transposed (precomputed in wrapper)
    # inv_var_ref: (1, K)  1 / explained_variance
    # res_ref:     (1, TM) lane-dense residual output block
    # t2_ref:      (1, TM) lane-dense T2 output block
    x = x_ref[...]
    mean = mean_ref[...]
    F = x_ref.shape[1]

    xc = x - mean                                                    # (TM, F)
    # score = (x - mean) @ comp.T -> plain MXU dot on pre-transposed weights.
    score = jnp.dot(xc, compT_ref[...],
                    preferred_element_type=jnp.float32)              # (TM, K)
    # x - inverse_transform(score) = x - (score @ comp + mean)
    #                              = xc - score @ comp   (mean cancels)
    diff = xc - jnp.dot(score, comp_ref[...],
                        preferred_element_type=jnp.float32)          # (TM, F)
    d2 = diff * diff

    # res[1, TM] = (1/F) * sum_F diff^2, produced lane-dense via a
    # weight-vector contraction (no (TM,1)->(1,TM) relayout, no masked stores).
    w_res = jnp.full_like(mean, 1.0 / F)                             # (1, F)
    res_ref[...] = lax.dot_general(
        w_res, d2, dimension_numbers=(((1,), (1,)), ((), ())),
        preferred_element_type=jnp.float32)                          # (1, TM)

    # t2[1, TM] = sum_K score^2 * (1 / explained_variance)
    s2 = score * score
    t2_ref[...] = lax.dot_general(
        inv_var_ref[...], s2, dimension_numbers=(((1,), (1,)), ((), ())),
        preferred_element_type=jnp.float32)                          # (1, TM)


# ---------------------------------------------------------------------------
# Chip-aware planning
# ---------------------------------------------------------------------------
def _tpu_caps():
    """Return (vmem_limit_bytes, tile_budget_bytes, multi_tensorcore)."""
    kind = ""
    try:
        kind = jax.devices()[0].device_kind.lower()
    except Exception:
        pass
    vmem_phys = None
    try:
        vmem_phys = int(pltpu.get_tpu_info().vmem_capacity_bytes)
    except Exception:
        pass
    if vmem_phys is None:
        vmem_phys = (64 << 20) if "v7" in kind else (128 << 20)
    # v5e / v6e ("lite" cores) have a single TensorCore; v4/v5p/v7x have 2.
    single_tc = any(t in kind for t in ("v5e", "v6e", "lite"))
    multi_tc = not single_tc
    if vmem_phys >= (96 << 20):          # 128 MiB-class chips (v5e/v6e/v5p/v4)
        vmem_limit = 96 << 20
        budget = 72 << 20
    else:                                # 64 MiB-class (v7x, per TensorCore)
        vmem_limit = 40 << 20
        budget = 26 << 20
    return vmem_limit, budget, multi_tc


def _plan_tiles(N, F, K, budget, multi_tc, cap=4096):
    """Pick (tm, G): sample-tile rows and grid size."""
    full = _round_up(N, 8)

    def fits(t):
        io = 2 * t * F * 4                        # double-buffered x tile
        weights = 2 * (2 * K * F + F + K) * 4     # comp, comp_T, mean, inv_var
        inter = 2 * t * F * 4 + 2 * t * K * 4     # ~2 live (t,F) + score/s2
        out = 2 * 2 * t * 4                       # two (1, tm) output buffers
        return io + weights + inter + out <= budget

    # Single tile (zero per-grid-step overhead) unless budget/cap forces a
    # split, or a multi-TC chip has enough rows to parallelise over.
    want_split = multi_tc and N >= 256
    if full <= cap and fits(full) and not want_split:
        return full, 1

    # Multi-tile: tm must be a multiple of 128 so the (1, tm) lane-dense
    # output blocks store unmasked.
    tm = _round_up(pl.cdiv(N, 2), 128) if want_split else _round_up(N, 128)
    tm = min(cap, tm)
    while tm > 128 and not fits(tm):
        tm -= 128
    tm = max(tm, 128)

    g = pl.cdiv(N, tm)
    if multi_tc and g > 1 and (g % 2) == 1:
        # Balance the two TensorCores: bump to the next even grid count.
        tm2 = _round_up(pl.cdiv(N, g + 1), 128)
        if tm2 >= 128:
            tm = tm2
            g = pl.cdiv(N, tm)
    return tm, g


# ---------------------------------------------------------------------------
# Wrapper
# ---------------------------------------------------------------------------
def pca_detect(x, mean, components, explained_variance, *, tm=None):
    """x: [N, F].  Returns (res[N], t2[N]) in float32."""
    x = jnp.asarray(x, jnp.float32)
    N, F = x.shape
    comp = jnp.asarray(components, jnp.float32)           # [K, F]
    K = comp.shape[0]

    vmem_limit, budget, multi_tc = _tpu_caps()
    if tm is None:
        tm, G = _plan_tiles(N, F, K, budget, multi_tc)
    else:
        tm = max(8, _round_up(tm, 8))
        G = pl.cdiv(N, tm)
        if G > 1:                       # lane-dense output blocks need 128-mult
            tm = _round_up(tm, 128)
            G = pl.cdiv(N, tm)

    Np = G * tm
    if Np != N:
        x = jnp.pad(x, ((0, Np - N), (0, 0)))   # padded rows sliced off below

    mean2 = mean_f32 = jnp.asarray(mean, jnp.float32).reshape(1, F)
    compT = comp.T                                          # [F, K]
    inv_var = (1.0 / jnp.asarray(explained_variance, jnp.float32)).reshape(1, K)

    res2, t22 = pl.pallas_call(
        pca_detect_kernel,
        out_shape=(jax.ShapeDtypeStruct((1, Np), jnp.float32),
                   jax.ShapeDtypeStruct((1, Np), jnp.float32)),
        grid_spec=pltpu.PrefetchScalarGridSpec(
            num_scalar_prefetch=0,
            grid=(G,),
            in_specs=[
                pl.BlockSpec((tm, F), lambda i: (i, 0)),   # x tile (streamed)
                pl.BlockSpec((1, F), lambda i: (0, 0)),    # mean (constant)
                pl.BlockSpec((K, F), lambda i: (0, 0)),    # components
                pl.BlockSpec((F, K), lambda i: (0, 0)),    # components.T
                pl.BlockSpec((1, K), lambda i: (0, 0)),    # 1/explained_variance
            ],
            out_specs=[
                pl.BlockSpec((1, tm), lambda i: (0, i)),   # res (lane-dense)
                pl.BlockSpec((1, tm), lambda i: (0, i)),   # t2  (lane-dense)
            ],
        ),
        compiler_params=pltpu.CompilerParams(
            dimension_semantics=("parallel",),
            vmem_limit_bytes=vmem_limit,
        ),
    )(x, mean2, comp, compT, inv_var)

    res = res2[0, :N]
    t2 = t22[0, :N]
    return res, t2


# ---------------------------------------------------------------------------
# Synthetic "fitted" PCA params + numpy reference + checks
# ---------------------------------------------------------------------------
# TODO(synk): Model.fit (SVD-based PCA fitting) is not implemented as a Pallas
# kernel; only the detect/forward inference path is, with fitted parameters
# synthesized here.
def _make_synthetic_pca_params(key, n_features, n_components):
    k1, k2, k3 = jax.random.split(key, 3)
    A = jax.random.normal(k1, (n_features, n_features), dtype=jnp.float32)
    Q, _ = jnp.linalg.qr(A)
    V = Q[:, :n_components]                    # [F, K] orthonormal columns
    components = V.T                           # [K, F] (sklearn convention)
    mean = jax.random.normal(k2, (n_features,), dtype=jnp.float32)
    ev = jnp.sort(jnp.abs(jax.random.normal(k3, (n_components,),
                                            dtype=jnp.float32)) + 0.5)[::-1]
    return mean, components, ev


def _reference_np(x, mean, components, ev):
    x = np.asarray(x, np.float64)
    mean = np.asarray(mean, np.float64)
    comp = np.asarray(components, np.float64)
    ev = np.asarray(ev, np.float64)
    score = (x - mean) @ comp.T
    rec = score @ comp + mean
    res = np.mean((x - rec) ** 2, axis=1)
    t2 = np.sum(score ** 2 / ev, axis=1)
    return res, t2


def _check(res, t2, x, mean, components, ev, tag):
    res_ref, t2_ref = _reference_np(x, mean, components, ev)
    assert np.allclose(np.asarray(res), res_ref, rtol=1e-3, atol=1e-3), \
        f"{tag}: res mismatch"
    assert np.allclose(np.asarray(t2), t2_ref, rtol=1e-3, atol=1e-3), \
        f"{tag}: t2 mismatch"


if __name__ == "__main__":
    key = jax.random.PRNGKey(0)

    # --- small case (matches the module's tiny example sizes) ---
    k_x, k_p, key = jax.random.split(key, 3)
    n_samples, n_features, n_components = 8, 32, 4
    x = jax.random.normal(k_x, (n_samples, n_features), dtype=jnp.float32)
    mean, components, ev = _make_synthetic_pca_params(k_p, n_features,
                                                      n_components)
    res, t2 = pca_detect(x, mean, components, ev)
    jax.block_until_ready((res, t2))
    _check(res, t2, x, mean, components, ev, "small")

    # --- larger case: exercises padding (N not a tile multiple) and, on
    #     multi-TensorCore chips, the balanced multi-step grid ---
    k_x2, k_p2 = jax.random.split(key)
    n_samples, n_features, n_components = 500, 128, 16
    x2 = jax.random.normal(k_x2, (n_samples, n_features), dtype=jnp.float32)
    mean2, comp2, ev2 = _make_synthetic_pca_params(k_p2, n_features,
                                                   n_components)
    res2, t22 = pca_detect(x2, mean2, comp2, ev2)
    jax.block_until_ready((res2, t22))
    _check(res2, t22, x2, mean2, comp2, ev2, "large")

    # --- forced multi-tile path (explicit tm) to cover the G > 1 layout ---
    res3, t23 = pca_detect(x2, mean2, comp2, ev2, tm=128)
    jax.block_until_ready((res3, t23))
    _check(res3, t23, x2, mean2, comp2, ev2, "forced-multi-tile")

    print("KERNEL_OK")
</pallas_src>

<mosaic_0001>
module attributes {stable_mosaic.version = 11 : i64} {
  func.func @pca_detect_kernel(%arg0: i32, %arg1: memref<8x32xf32, #tpu.memory_space<vmem>>, %arg2: memref<1x32xf32, #tpu.memory_space<vmem>>, %arg3: memref<4x32xf32, #tpu.memory_space<vmem>>, %arg4: memref<32x4xf32, #tpu.memory_space<vmem>>, %arg5: memref<1x4xf32, #tpu.memory_space<vmem>>, %arg6: memref<1x8xf32, #tpu.memory_space<vmem>>, %arg7: memref<1x8xf32, #tpu.memory_space<vmem>>) attributes {dimension_semantics = [#tpu.dimension_semantics<parallel>], iteration_bounds = array<i64: 1>, scalar_prefetch = 0 : i64, scratch_operands = 0 : i64, tpu.core_type = #tpu.core_type<tc>, window_params = [{transform_indices = @transform_0, window_bounds = array<i64: 8, 32>}, {pipeline_mode = #tpu.pipeline_mode<synchronous>, transform_indices = @transform_1, window_bounds = array<i64: 1, 32>}, {pipeline_mode = #tpu.pipeline_mode<synchronous>, transform_indices = @transform_2, window_bounds = array<i64: 4, 32>}, {pipeline_mode = #tpu.pipeline_mode<synchronous>, transform_indices = @transform_3, window_bounds = array<i64: 32, 4>}, {pipeline_mode = #tpu.pipeline_mode<synchronous>, transform_indices = @transform_4, window_bounds = array<i64: 1, 4>}, {transform_indices = @transform_5, window_bounds = array<i64: 1, 8>}, {transform_indices = @transform_6, window_bounds = array<i64: 1, 8>}]} {
    %c0 = arith.constant 0 : index
    %c0_0 = arith.constant 0 : index
    %0 = vector.load %arg1[%c0, %c0_0] : memref<8x32xf32, #tpu.memory_space<vmem>>, vector<8x32xf32>
    %c0_1 = arith.constant 0 : index
    %c0_2 = arith.constant 0 : index
    %1 = vector.load %arg2[%c0_1, %c0_2] : memref<1x32xf32, #tpu.memory_space<vmem>>, vector<1x32xf32>
    %2 = vector.broadcast %1 : vector<1x32xf32> to vector<8x32xf32>
    %3 = arith.subf %0, %2 : vector<8x32xf32>
    %c0_3 = arith.constant 0 : index
    %c0_4 = arith.constant 0 : index
    %4 = vector.load %arg4[%c0_3, %c0_4] : memref<32x4xf32, #tpu.memory_space<vmem>>, vector<32x4xf32>
    %cst = arith.constant dense<0.000000e+00> : vector<8x4xf32>
    %5 = tpu.matmul %3, %4, %cst {dimension_numbers = #tpu.dot_dimension_numbers<[1], [0], [0], [1], [0, 0, 1, 1], [], []>} : vector<8x32xf32>, vector<32x4xf32>, vector<8x4xf32> -> vector<8x4xf32>
    %c0_5 = arith.constant 0 : index
    %c0_6 = arith.constant 0 : index
    %6 = vector.load %arg3[%c0_5, %c0_6] : memref<4x32xf32, #tpu.memory_space<vmem>>, vector<4x32xf32>
    %cst_7 = arith.constant dense<0.000000e+00> : vector<8x32xf32>
    %7 = tpu.matmul %5, %6, %cst_7 {dimension_numbers = #tpu.dot_dimension_numbers<[1], [0], [0], [1], [0, 0, 1, 1], [], []>} : vector<8x4xf32>, vector<4x32xf32>, vector<8x32xf32> -> vector<8x32xf32>
    %8 = arith.subf %3, %7 : vector<8x32xf32>
    %9 = arith.mulf %8, %8 : vector<8x32xf32>
    %cst_8 = arith.constant 3.125000e-02 : f32
    %10 = vector.broadcast %cst_8 : f32 to vector<1x32xf32>
    %cst_9 = arith.constant dense<0.000000e+00> : vector<1x8xf32>
    %11 = tpu.matmul %10, %9, %cst_9 {dimension_numbers = #tpu.dot_dimension_numbers<[1], [1], [0], [0], [0, 0, 1, 0], [], []>} : vector<1x32xf32>, vector<8x32xf32>, vector<1x8xf32> -> vector<1x8xf32>
    %c0_10 = arith.constant 0 : index
    %c0_11 = arith.constant 0 : index
    %12 = vector.load %arg6[%c0_10, %c0_11] : memref<1x8xf32, #tpu.memory_space<vmem>>, vector<1x8xf32>
    tpu.vector_store %arg6[%c0_10, %c0_11], %11 {strides = array<i32>} : memref<1x8xf32, #tpu.memory_space<vmem>>, vector<1x8xf32>,
    %13 = arith.mulf %5, %5 : vector<8x4xf32>
    %c0_12 = arith.constant 0 : index
    %c0_13 = arith.constant 0 : index
    %14 = vector.load %arg5[%c0_12, %c0_13] : memref<1x4xf32, #tpu.memory_space<vmem>>, vector<1x4xf32>
    %cst_14 = arith.constant dense<0.000000e+00> : vector<1x8xf32>
    %15 = tpu.matmul %14, %13, %cst_14 {dimension_numbers = #tpu.dot_dimension_numbers<[1], [1], [0], [0], [0, 0, 1, 0], [], []>} : vector<1x4xf32>, vector<8x4xf32>, vector<1x8xf32> -> vector<1x8xf32>
    %c0_15 = arith.constant 0 : index
    %c0_16 = arith.constant 0 : index
    %16 = vector.load %arg7[%c0_15, %c0_16] : memref<1x8xf32, #tpu.memory_space<vmem>>, vector<1x8xf32>
    tpu.vector_store %arg7[%c0_15, %c0_16], %15 {strides = array<i32>} : memref<1x8xf32, #tpu.memory_space<vmem>>, vector<1x8xf32>,
    return
  }
  func.func @transform_0(%arg0: i32) -> (i32, i32) {
    %c0_i32 = arith.constant 0 : i32
    %c0_i32_0 = arith.constant 0 : i32
    return %arg0, %c0_i32 : i32, i32
  }
  func.func @transform_1(%arg0: i32) -> (i32, i32) {
    %c0_i32 = arith.constant 0 : i32
    %c0_i32_0 = arith.constant 0 : i32
    %c0_i32_1 = arith.constant 0 : i32
    return %c0_i32, %c0_i32_0 : i32, i32
  }
  func.func @transform_2(%arg0: i32) -> (i32, i32) {
    %c0_i32 = arith.constant 0 : i32
    %c0_i32_0 = arith.constant 0 : i32
    %c0_i32_1 = arith.constant 0 : i32
    return %c0_i32, %c0_i32_0 : i32, i32
  }
  func.func @transform_3(%arg0: i32) -> (i32, i32) {
    %c0_i32 = arith.constant 0 : i32
    %c0_i32_0 = arith.constant 0 : i32
    %c0_i32_1 = arith.constant 0 : i32
    return %c0_i32, %c0_i32_0 : i32, i32
  }
  func.func @transform_4(%arg0: i32) -> (i32, i32) {
    %c0_i32 = arith.constant 0 : i32
    %c0_i32_0 = arith.constant 0 : i32
    %c0_i32_1 = arith.constant 0 : i32
    return %c0_i32, %c0_i32_0 : i32, i32
  }
  func.func @transform_5(%arg0: i32) -> (i32, i32) {
    %c0_i32 = arith.constant 0 : i32
    %c0_i32_0 = arith.constant 0 : i32
    return %c0_i32, %arg0 : i32, i32
  }
  func.func @transform_6(%arg0: i32) -> (i32, i32) {
    %c0_i32 = arith.constant 0 : i32
    %c0_i32_0 = arith.constant 0 : i32
    return %c0_i32, %arg0 : i32, i32
  }
}

</mosaic_0001>

<llo_original>
// kernel: tpu_custom_call.1
$region0: #{tpu_custom_call.1}
  #allocation0 [shape = 'u32[]', space=smem, size = 0x4, offset = 0x4, fixed_abs, tag = 'smem constant byte address 0x4 - core index']
  #allocation1 [shape = 'u32[144,128]{1,0:T(1,128)}', space=vmem, size = 0x12000, scoped, tag = 'internal scratch']
  %s0 = inlined_call_operand.hbm [shape: f32[8,32], index: 0, kind: input, shape index: {}]
  %s1 = inlined_call_operand.hbm [shape: f32[1,32], index: 1, kind: input, shape index: {}]
  %s2 = inlined_call_operand.hbm [shape: f32[4,32], index: 2, kind: input, shape index: {}]
  %s3 = inlined_call_operand.hbm [shape: f32[32,4], index: 3, kind: input, shape index: {}]
  %s4 = inlined_call_operand.hbm [shape: f32[1,4], index: 4, kind: input, shape index: {}]
  %s5 = inlined_call_operand.hbm [shape: f32[1,8], index: 5, kind: output, shape index: {0}]
  %s6 = inlined_call_operand.hbm [shape: f32[1,8], index: 6, kind: output, shape index: {1}]
  %7 = xla_tuple %s5, %s6
  %s8 = sld [smem:[#allocation0]]
  $region58: #{tpu_custom_call.1} parent=0
    _
  %s10 = ssub.s32 1, %s8
  %s11 = scalar_select 0, %s10, %s8
  $region1: #{tpu_custom_call.1} parent=0
    #allocation2 [shape = 'u8[4096]{0}', space=vmem, size = 0x1000, scoped, tag = 'input window, operand 0, single buffered']
    #allocation3 [shape = 's32[1]{0}', space=sflag, size = 0x4, scoped, tag = 'scoped memory for tpu_custom_call.1']
    #allocation4 [shape = 's32[1]{0}', space=sflag, size = 0x4, scoped, tag = 'scoped memory for tpu_custom_call.1']
    #allocation5 [shape = 'u8[512]{0}', space=vmem, size = 0x400, scoped, tag = 'input window, operand 1, single buffered']
    #allocation6 [shape = 's32[1]{0}', space=sflag, size = 0x4, scoped, tag = 'scoped memory for tpu_custom_call.1']
    #allocation7 [shape = 'u8[2048]{0}', space=vmem, size = 0x800, scoped, tag = 'input window, operand 2, single buffered']
    #allocation8 [shape = 'u8[16384]{0}', space=vmem, size = 0x4000, scoped, tag = 'input window, operand 3, single buffered']
    #allocation9 [shape = 's32[1]{0}', space=sflag, size = 0x4, scoped, tag = 'scoped memory for tpu_custom_call.1']
    #allocation10 [shape = 'u8[512]{0}', space=vmem, size = 0x400, scoped, tag = 'input window, operand 4, single buffered']
    #allocation11 [shape = 'u8[512]{0}', space=vmem, size = 0x400, scoped, tag = 'output window, operand 0, single buffered']
    #allocation12 [shape = 'u8[512]{0}', space=vmem, size = 0x400, scoped, tag = 'output window, operand 1, single buffered']
    #allocation13 [shape = 's32[1]{0}', space=sflag, size = 0x4, scoped, tag = 'scoped memory for tpu_custom_call.1']
    %12 = vsyncpa [#allocation3], 0
    %13 = vsyncpa [#allocation6], 0
    %14 = vsyncpa [#allocation9], 0
    %15 = vsyncpa [#allocation4], 0
    %16 = vsyncpa [#allocation13], 0
    // Predicated region
    $region2: #{tpu_custom_call.1} parent=1 // pred_check
      _
    $region3: #{tpu_custom_call.1} parent=1 // pred_check_branch
      %18 = sbr.rel (0) target = $region5
    $region4: #{tpu_custom_call.1} parent=1 // pred_region
      %s20 = ssub.s32 128, 128
      %21 = vsyncadd [#allocation3], %s20
      %s23 = sshll.u32 [#allocation2], 4
      %s24 = int_to_ptr.vmem [resolvable:$true] %s23
      %26 = dma.hbm_to_vmem [thread:$0]  %s0, 128, %s24, [#allocation3]
    $region5: #{tpu_custom_call.1} parent=1 // pred_fallthru
      _
    // Predicated region
    $region6: #{tpu_custom_call.1} parent=1 // pred_check
      _
    $region7: #{tpu_custom_call.1} parent=1 // pred_check_branch
      %28 = sbr.rel (0) target = $region9
    $region8: #{tpu_custom_call.1} parent=1 // pred_region
      %s30 = ssub.s32 16, 16
      %31 = vsyncadd [#allocation6], %s30
      %s33 = sshll.u32 [#allocation5], 4
      %s34 = int_to_ptr.vmem [resolvable:$true] %s33
      %36 = dma.hbm_to_vmem [thread:$0]  %s1, 16, %s34, [#allocation6]
    $region9: #{tpu_custom_call.1} parent=1 // pred_fallthru
      _
    // Predicated region
    $region10: #{tpu_custom_call.1} parent=1 // pred_check
      _
    $region11: #{tpu_custom_call.1} parent=1 // pred_check_branch
      %38 = sbr.rel (0) target = $region13
    $region12: #{tpu_custom_call.1} parent=1 // pred_region
      %s40 = ssub.s32 64, 64
      %41 = vsyncadd [#allocation6], %s40
      %s43 = sshll.u32 [#allocation7], 4
      %s44 = int_to_ptr.vmem [resolvable:$true] %s43
      %46 = dma.hbm_to_vmem [thread:$0]  %s2, 64, %s44, [#allocation6]
    $region13: #{tpu_custom_call.1} parent=1 // pred_fallthru
      _
    // Predicated region
    $region14: #{tpu_custom_call.1} parent=1 // pred_check
      _
    $region15: #{tpu_custom_call.1} parent=1 // pred_check_branch
      %48 = sbr.rel (0) target = $region17
    $region16: #{tpu_custom_call.1} parent=1 // pred_region
      %s50 = ssub.s32 512, 512
      %51 = vsyncadd [#allocation9], %s50
      %s52 = sshll.u32 [#allocation8], 4
      %s53 = int_to_ptr.vmem [resolvable:$true] %s52
      %58 = dma.hbm_to_vmem [thread:$0]  %s3, 512, %s53, [#allocation9], 128, 128, 8
    $region17: #{tpu_custom_call.1} parent=1 // pred_fallthru
      _
    // Predicated region
    $region18: #{tpu_custom_call.1} parent=1 // pred_check
      _
    $region19: #{tpu_custom_call.1} parent=1 // pred_check_branch
      %60 = sbr.rel (0) target = $region21
    $region20: #{tpu_custom_call.1} parent=1 // pred_region
      %s62 = ssub.s32 16, 16
      %63 = vsyncadd [#allocation9], %s62
      %s65 = sshll.u32 [#allocation10], 4
      %s66 = int_to_ptr.vmem [resolvable:$true] %s65
      %68 = dma.hbm_to_vmem [thread:$0]  %s4, 16, %s66, [#allocation9]
    $region21: #{tpu_custom_call.1} parent=1 // pred_fallthru
      _
    // Predicated region
    $region22: #{tpu_custom_call.1} parent=1 // pred_check
      _
    $region23: #{tpu_custom_call.1} parent=1 // pred_check_branch
      %70 = sbr.rel (0) target = $region25
    $region24: #{tpu_custom_call.1} parent=1 // pred_region
      %71 = dma.done [#allocation3], 128
    $region25: #{tpu_custom_call.1} parent=1 // pred_fallthru
      _
    // Predicated region
    $region26: #{tpu_custom_call.1} parent=1 // pred_check
      _
    $region27: #{tpu_custom_call.1} parent=1 // pred_check_branch
      %73 = sbr.rel (0) target = $region29
    $region28: #{tpu_custom_call.1} parent=1 // pred_region
      %74 = dma.done [#allocation6], 16
    $region29: #{tpu_custom_call.1} parent=1 // pred_fallthru
      _
    // Predicated region
    $region30: #{tpu_custom_call.1} parent=1 // pred_check
      _
    $region31: #{tpu_custom_call.1} parent=1 // pred_check_branch
      %76 = sbr.rel (0) target = $region33
    $region32: #{tpu_custom_call.1} parent=1 // pred_region
      %77 = dma.done [#allocation6], 64
    $region33: #{tpu_custom_call.1} parent=1 // pred_fallthru
      _
    // Predicated region
    $region34: #{tpu_custom_call.1} parent=1 // pred_check
      _
    $region35: #{tpu_custom_call.1} parent=1 // pred_check_branch
      %79 = sbr.rel (0) target = $region37
    $region36: #{tpu_custom_call.1} parent=1 // pred_region
      %80 = dma.done [#allocation9], 512
    $region37: #{tpu_custom_call.1} parent=1 // pred_fallthru
      _
    // Predicated region
    $region38: #{tpu_custom_call.1} parent=1 // pred_check
      _
    $region39: #{tpu_custom_call.1} parent=1 // pred_check_branch
      %82 = sbr.rel (0) target = $region41
    $region40: #{tpu_custom_call.1} parent=1 // pred_region
      %83 = dma.done [#allocation9], 16
    $region41: #{tpu_custom_call.1} parent=1 // pred_fallthru
      _
    %v84 = vld [vmem:[#allocation2] sm:$0xff]
    %v85 = vld [vmem:[#allocation5] sm:$0x1]
    %v87 = vlaneseq
    %v88 = vshrl.u32 %v87, 7
    %v89 = vsub.s32 0, %v88
    %v90 = vrot.slane %v85, %v89
    %v92 = vsub.f32 %v84, %v90
    %v93 = vld [vmem:[#allocation8] sm:$0xff]
    %v94 = vld [vmem:[#allocation8 + $0x8] sm:$0xff]
    %v95 = vld [vmem:[#allocation8 + $0x10] sm:$0xff]
    %v96 = vld [vmem:[#allocation8 + $0x18] sm:$0xff]
    %vm97 = vcmask 261120
    %v99 = vsel %vm97, %v92, 0
    %101 = vmatprep.subr.mxu0 0.0
    %102 = vmatpush1.msra.mxu0 %v93
    %103 = vmatprep.subr.mxu0 0.0
    %104 = vmatpush1.msra.mxu0 %v94
    %105 = vmatprep.subr.mxu0 0.0
    %106 = vmatpush1.msra.mxu0 %v95
    %107 = vmatprep.subr.mxu0 0.0
    %108 = vmatpush1.msra.mxu0 %v96
    %109 = vmatprep.subr.mxu0 0.0
    %110 = vmatpush1.msra.mxu0 0.0
    %111 = vmatprep.subr.mxu0 0.0
    %112 = vmatpush1.msra.mxu0 0.0
    %113 = vmatprep.subr.mxu0 0.0
    %114 = vmatpush1.msra.mxu0 0.0
    %115 = vmatprep.subr.mxu0 0.0
    %116 = vmatpush1.msra.mxu0 0.0
    %117 = vmatprep.subr.mxu0 0.0
    %118 = vmatpush1.msra.mxu0 0.0
    %119 = vmatprep.subr.mxu0 0.0
    %120 = vmatpush1.msra.mxu0 0.0
    %121 = vmatprep.subr.mxu0 0.0
    %122 = vmatpush1.msra.mxu0 0.0
    %123 = vmatprep.subr.mxu0 0.0
    %124 = vmatpush1.msra.mxu0 0.0
    %125 = vmatprep.subr.mxu0 0.0
    %126 = vmatpush1.msra.mxu0 0.0
    %127 = vmatprep.subr.mxu0 0.0
    %128 = vmatpush1.msra.mxu0 0.0
    %129 = vmatprep.subr.mxu0 0.0
    %130 = vmatpush1.msra.mxu0 0.0
    %131 = vmatprep.subr.mxu0 0.0
    %132 = vmatpush1.msra.mxu0 0.0
    %133 = vmatprep.subr.mxu0 0.0
    %134 = vmatpush1.msra.mxu0 0.0
    %135 = vmatprep.subr.mxu0 0.0
    %136 = vmatpush1.msra.mxu0 0.0
    %137 = vmatprep.subr.mxu0 0.0
    %138 = vmatpush1.msra.mxu0 0.0
    %139 = vmatprep.subr.mxu0 0.0
    %140 = vmatpush1.msra.mxu0 0.0
    %141 = vmatprep.subr.mxu0 0.0
    %142 = vmatpush1.msra.mxu0 0.0
    %143 = vmatprep.subr.mxu0 0.0
    %144 = vmatpush1.msra.mxu0 0.0
    %145 = vmatprep.subr.mxu0 0.0
    %146 = vmatpush1.msra.mxu0 0.0
    %147 = vmatprep.subr.mxu0 0.0
    %148 = vmatpush1.msra.mxu0 0.0
    %149 = vmatprep.subr.mxu0 0.0
    %150 = vmatpush1.msra.mxu0 0.0
    %151 = vmatprep.subr.mxu0 0.0
    %152 = vmatpush1.msra.mxu0 0.0
    %153 = vmatprep.subr.mxu0 0.0
    %154 = vmatpush1.msra.mxu0 0.0
    %155 = vmatprep.subr.mxu0 0.0
    %156 = vmatpush1.msra.mxu0 0.0
    %157 = vmatprep.subr.mxu0 0.0
    %158 = vmatpush1.msra.mxu0 0.0
    %159 = vmatprep.subr.mxu0 0.0
    %160 = vmatpush1.msra.mxu0 0.0
    %161 = vmatprep.subr.mxu0 0.0
    %162 = vmatpush1.msra.mxu0 0.0
    %163 = vmatprep.subr.mxu0 0.0
    %164 = vmatpush1.msra.mxu0 0.0
    %165 = vmatprep.mubr.f32.mxu0 0.0
    %166 = vmatmul.mubr.f32.gmra.mrb[0].mxu0 %v99
    %v167 = vpop.f32.mrb[0].mxu0
    %v168 = vadd.f32 0.0, %v167
    %v169 = vpop.f32.mrb[0].mxu0
    %170 = vdwg.mxu0
    %v171 = vld [vmem:[#allocation7] sm:$0xf]
    %vm172 = vcmask 31744
    %v174 = vsel %vm172, %v168, 0
    %vm176 = vcmask 1043456
    %v178 = vsel %vm176, %v171, 0
    %180 = vmatprep.subr.mxu0 0.0
    %181 = vmatpush1.msra.mxu0 %v178
    %182 = vmatprep.subr.mxu0 0.0
    %183 = vmatpush1.msra.mxu0 0.0
    %184 = vmatprep.subr.mxu0 0.0
    %185 = vmatpush1.msra.mxu0 0.0
    %186 = vmatprep.subr.mxu0 0.0
    %187 = vmatpush1.msra.mxu0 0.0
    %188 = vmatprep.subr.mxu0 0.0
    %189 = vmatpush1.msra.mxu0 0.0
    %190 = vmatprep.subr.mxu0 0.0
    %191 = vmatpush1.msra.mxu0 0.0
    %192 = vmatprep.subr.mxu0 0.0
    %193 = vmatpush1.msra.mxu0 0.0
    %194 = vmatprep.subr.mxu0 0.0
    %195 = vmatpush1.msra.mxu0 0.0
    %196 = vmatprep.subr.mxu0 0.0
    %197 = vmatpush1.msra.mxu0 0.0
    %198 = vmatprep.subr.mxu0 0.0
    %199 = vmatpush1.msra.mxu0 0.0
    %200 = vmatprep.subr.mxu0 0.0
    %201 = vmatpush1.msra.mxu0 0.0
    %202 = vmatprep.subr.mxu0 0.0
    %203 = vmatpush1.msra.mxu0 0.0
    %204 = vmatprep.subr.mxu0 0.0
    %205 = vmatpush1.msra.mxu0 0.0
    %206 = vmatprep.subr.mxu0 0.0
    %207 = vmatpush1.msra.mxu0 0.0
    %208 = vmatprep.subr.mxu0 0.0
    %209 = vmatpush1.msra.mxu0 0.0
    %210 = vmatprep.subr.mxu0 0.0
    %211 = vmatpush1.msra.mxu0 0.0
    %212 = vmatprep.subr.mxu0 0.0
    %213 = vmatpush1.msra.mxu0 0.0
    %214 = vmatprep.subr.mxu0 0.0
    %215 = vmatpush1.msra.mxu0 0.0
    %216 = vmatprep.subr.mxu0 0.0
    %217 = vmatpush1.msra.mxu0 0.0
    %218 = vmatprep.subr.mxu0 0.0
    %219 = vmatpush1.msra.mxu0 0.0
    %220 = vmatprep.subr.mxu0 0.0
    %221 = vmatpush1.msra.mxu0 0.0
    %222 = vmatprep.subr.mxu0 0.0
    %223 = vmatpush1.msra.mxu0 0.0
    %224 = vmatprep.subr.mxu0 0.0
    %225 = vmatpush1.msra.mxu0 0.0
    %226 = vmatprep.subr.mxu0 0.0
    %227 = vmatpush1.msra.mxu0 0.0
    %228 = vmatprep.subr.mxu0 0.0
    %229 = vmatpush1.msra.mxu0 0.0
    %230 = vmatprep.subr.mxu0 0.0
    %231 = vmatpush1.msra.mxu0 0.0
    %232 = vmatprep.subr.mxu0 0.0
    %233 = vmatpush1.msra.mxu0 0.0
    %234 = vmatprep.subr.mxu0 0.0
    %235 = vmatpush1.msra.mxu0 0.0
    %236 = vmatprep.subr.mxu0 0.0
    %237 = vmatpush1.msra.mxu0 0.0
    %238 = vmatprep.subr.mxu0 0.0
    %239 = vmatpush1.msra.mxu0 0.0
    %240 = vmatprep.subr.mxu0 0.0
    %241 = vmatpush1.msra.mxu0 0.0
    %242 = vmatprep.subr.mxu0 0.0
    %243 = vmatpush1.msra.mxu0 0.0
    %244 = vmatprep.mubr.f32.mxu0 0.0
    %245 = vmatmul.mubr.f32.gmra.mrb[0].mxu0 %v174
    %v246 = vpop.f32.mrb[0].mxu0
    %v247 = vadd.f32 0.0, %v246
    %v248 = vpop.f32.mrb[0].mxu0
    %249 = vdwg.mxu0
    %v250 = vsub.f32 %v92, %v247
    %v251 = vmul.f32 %v250, %v250
    %v253 = vsel %vm97, 0.03125, 0
    %v256 = vsel %vm97, %v251, 0
    %258 = vmatprep.subr.mxu0 0.0
    %259 = vmatpush1.xpose.msra.mxu0 %v256
    %260 = vmatprep.subr.mxu0 0.0
    %261 = vmatpush1.xpose.msra.mxu0 0.0
    %262 = vmatprep.subr.mxu0 0.0
    %263 = vmatpush1.xpose.msra.mxu0 0.0
    %264 = vmatprep.subr.mxu0 0.0
    %265 = vmatpush1.xpose.msra.mxu0 0.0
    %266 = vmatprep.subr.mxu0 0.0
    %267 = vmatpush1.xpose.msra.mxu0 0.0
    %268 = vmatprep.subr.mxu0 0.0
    %269 = vmatpush1.xpose.msra.mxu0 0.0
    %270 = vmatprep.subr.mxu0 0.0
    %271 = vmatpush1.xpose.msra.mxu0 0.0
    %272 = vmatprep.subr.mxu0 0.0
    %273 = vmatpush1.xpose.msra.mxu0 0.0
    %274 = vmatprep.subr.mxu0 0.0
    %275 = vmatpush1.xpose.msra.mxu0 0.0
    %276 = vmatprep.subr.mxu0 0.0
    %277 = vmatpush1.xpose.msra.mxu0 0.0
    %278 = vmatprep.subr.mxu0 0.0
    %279 = vmatpush1.xpose.msra.mxu0 0.0
    %280 = vmatprep.subr.mxu0 0.0
    %281 = vmatpush1.xpose.msra.mxu0 0.0
    %282 = vmatprep.subr.mxu0 0.0
    %283 = vmatpush1.xpose.msra.mxu0 0.0
    %284 = vmatprep.subr.mxu0 0.0
    %285 = vmatpush1.xpose.msra.mxu0 0.0
    %286 = vmatprep.subr.mxu0 0.0
    %287 = vmatpush1.xpose.msra.mxu0 0.0
    %288 = vmatprep.subr.mxu0 0.0
    %289 = vmatpush1.xpose.msra.mxu0 0.0
    %290 = vmatprep.subr.mxu0 0.0
    %291 = vmatpush1.xpose.msra.mxu0 0.0
    %292 = vmatprep.subr.mxu0 0.0
    %293 = vmatpush1.xpose.msra.mxu0 0.0
    %294 = vmatprep.subr.mxu0 0.0
    %295 = vmatpush1.xpose.msra.mxu0 0.0
    %296 = vmatprep.subr.mxu0 0.0
    %297 = vmatpush1.xpose.msra.mxu0 0.0
    %298 = vmatprep.subr.mxu0 0.0
    %299 = vmatpush1.xpose.msra.mxu0 0.0
    %300 = vmatprep.subr.mxu0 0.0
    %301 = vmatpush1.xpose.msra.mxu0 0.0
    %302 = vmatprep.subr.mxu0 0.0
    %303 = vmatpush1.xpose.msra.mxu0 0.0
    %304 = vmatprep.subr.mxu0 0.0
    %305 = vmatpush1.xpose.msra.mxu0 0.0
    %306 = vmatprep.subr.mxu0 0.0
    %307 = vmatpush1.xpose.msra.mxu0 0.0
    %308 = vmatprep.subr.mxu0 0.0
    %309 = vmatpush1.xpose.msra.mxu0 0.0
    %310 = vmatprep.subr.mxu0 0.0
    %311 = vmatpush1.xpose.msra.mxu0 0.0
    %312 = vmatprep.subr.mxu0 0.0
    %313 = vmatpush1.xpose.msra.mxu0 0.0
    %314 = vmatprep.subr.mxu0 0.0
    %315 = vmatpush1.xpose.msra.mxu0 0.0
    %316 = vmatprep.subr.mxu0 0.0
    %317 = vmatpush1.xpose.msra.mxu0 0.0
    %318 = vmatprep.subr.mxu0 0.0
    %319 = vmatpush1.xpose.msra.mxu0 0.0
    %320 = vmatprep.subr.mxu0 0.0
    %321 = vmatpush1.xpose.msra.mxu0 0.0
    %322 = vmatprep.mubr.f32.mxu0 0.0
    %323 = vmatmul.mubr.f32.gmra.mrb[0].mxu0 %v253
    %v324 = vpop.f32.mrb[0].mxu0
    %v325 = vadd.f32 0.0, %v324
    %v326 = vpop.f32.mrb[0].mxu0
    %327 = vdwg.mxu0
    %vm328 = vcmask 57344
    %329 = vst.msk [vmem:[#allocation11] sm:$0x1] %vm328, %v325
    %v330 = vmul.f32 %v168, %v168
    %v331 = vld [vmem:[#allocation10] sm:$0x1]
    %v333 = vsel %vm172, %v331, 0
    %v336 = vsel %vm172, %v330, 0
    %338 = vmatprep.subr.mxu0 0.0
    %339 = vmatpush1.xpose.msra.mxu0 %v336
    %340 = vmatprep.subr.mxu0 0.0
    %341 = vmatpush1.xpose.msra.mxu0 0.0
    %342 = vmatprep.subr.mxu0 0.0
    %343 = vmatpush1.xpose.msra.mxu0 0.0
    %344 = vmatprep.subr.mxu0 0.0
    %345 = vmatpush1.xpose.msra.mxu0 0.0
    %346 = vmatprep.subr.mxu0 0.0
    %347 = vmatpush1.xpose.msra.mxu0 0.0
    %348 = vmatprep.subr.mxu0 0.0
    %349 = vmatpush1.xpose.msra.mxu0 0.0
    %350 = vmatprep.subr.mxu0 0.0
    %351 = vmatpush1.xpose.msra.mxu0 0.0
    %352 = vmatprep.subr.mxu0 0.0
    %353 = vmatpush1.xpose.msra.mxu0 0.0
    %354 = vmatprep.subr.mxu0 0.0
    %355 = vmatpush1.xpose.msra.mxu0 0.0
    %356 = vmatprep.subr.mxu0 0.0
    %357 = vmatpush1.xpose.msra.mxu0 0.0
    %358 = vmatprep.subr.mxu0 0.0
    %359 = vmatpush1.xpose.msra.mxu0 0.0
    %360 = vmatprep.subr.mxu0 0.0
    %361 = vmatpush1.xpose.msra.mxu0 0.0
    %362 = vmatprep.subr.mxu0 0.0
    %363 = vmatpush1.xpose.msra.mxu0 0.0
    %364 = vmatprep.subr.mxu0 0.0
    %365 = vmatpush1.xpose.msra.mxu0 0.0
    %366 = vmatprep.subr.mxu0 0.0
    %367 = vmatpush1.xpose.msra.mxu0 0.0
    %368 = vmatprep.subr.mxu0 0.0
    %369 = vmatpush1.xpose.msra.mxu0 0.0
    %370 = vmatprep.subr.mxu0 0.0
    %371 = vmatpush1.xpose.msra.mxu0 0.0
    %372 = vmatprep.subr.mxu0 0.0
    %373 = vmatpush1.xpose.msra.mxu0 0.0
    %374 = vmatprep.subr.mxu0 0.0
    %375 = vmatpush1.xpose.msra.mxu0 0.0
    %376 = vmatprep.subr.mxu0 0.0
    %377 = vmatpush1.xpose.msra.mxu0 0.0
    %378 = vmatprep.subr.mxu0 0.0
    %379 = vmatpush1.xpose.msra.mxu0 0.0
    %380 = vmatprep.subr.mxu0 0.0
    %381 = vmatpush1.xpose.msra.mxu0 0.0
    %382 = vmatprep.subr.mxu0 0.0
    %383 = vmatpush1.xpose.msra.mxu0 0.0
    %384 = vmatprep.subr.mxu0 0.0
    %385 = vmatpush1.xpose.msra.mxu0 0.0
    %386 = vmatprep.subr.mxu0 0.0
    %387 = vmatpush1.xpose.msra.mxu0 0.0
    %388 = vmatprep.subr.mxu0 0.0
    %389 = vmatpush1.xpose.msra.mxu0 0.0
    %390 = vmatprep.subr.mxu0 0.0
    %391 = vmatpush1.xpose.msra.mxu0 0.0
    %392 = vmatprep.subr.mxu0 0.0
    %393 = vmatpush1.xpose.msra.mxu0 0.0
    %394 = vmatprep.subr.mxu0 0.0
    %395 = vmatpush1.xpose.msra.mxu0 0.0
    %396 = vmatprep.subr.mxu0 0.0
    %397 = vmatpush1.xpose.msra.mxu0 0.0
    %398 = vmatprep.subr.mxu0 0.0
    %399 = vmatpush1.xpose.msra.mxu0 0.0
    %400 = vmatprep.subr.mxu0 0.0
    %401 = vmatpush1.xpose.msra.mxu0 0.0
    %402 = vmatprep.mubr.f32.mxu0 0.0
    %403 = vmatmul.mubr.f32.gmra.mrb[0].mxu0 %v333
    %v404 = vpop.f32.mrb[0].mxu0
    %v405 = vadd.f32 0.0, %v404
    %v406 = vpop.f32.mrb[0].mxu0
    %407 = vdwg.mxu0
    %408 = vst.msk [vmem:[#allocation12] sm:$0x1] %vm328, %v405
    // Predicated region
    $region42: #{tpu_custom_call.1} parent=1 // pred_check
      _
    $region43: #{tpu_custom_call.1} parent=1 // pred_check_branch
      %410 = sbr.rel (0) target = $region45
    $region44: #{tpu_custom_call.1} parent=1 // pred_region
      %s412 = ssub.s32 16, 16
      %413 = vsyncadd [#allocation4], %s412
      %s415 = sshll.u32 [#allocation11], 4
      %s416 = int_to_ptr.vmem [resolvable:$true] %s415
      %418 = dma.vmem_to_hbm [thread:$0]  %s416, 16, %s5, [#allocation4]
    $region45: #{tpu_custom_call.1} parent=1 // pred_fallthru
      _
    // Predicated region
    $region46: #{tpu_custom_call.1} parent=1 // pred_check
      _
    $region47: #{tpu_custom_call.1} parent=1 // pred_check_branch
      %420 = sbr.rel (0) target = $region49
    $region48: #{tpu_custom_call.1} parent=1 // pred_region
      %s422 = ssub.s32 16, 16
      %423 = vsyncadd [#allocation13], %s422
      %s425 = sshll.u32 [#allocation12], 4
      %s426 = int_to_ptr.vmem [resolvable:$true] %s425
      %428 = dma.vmem_to_hbm [thread:$0]  %s426, 16, %s6, [#allocation13]
    $region49: #{tpu_custom_call.1} parent=1 // pred_fallthru
      _
    // Predicated region
    $region50: #{tpu_custom_call.1} parent=1 // pred_check
      _
    $region51: #{tpu_custom_call.1} parent=1 // pred_check_branch
      %430 = sbr.rel (0) target = $region53
    $region52: #{tpu_custom_call.1} parent=1 // pred_region
      %431 = dma.done [#allocation4], 16
    $region53: #{tpu_custom_call.1} parent=1 // pred_fallthru
      _
    // Predicated region
    $region54: #{tpu_custom_call.1} parent=1 // pred_check
      _
    $region55: #{tpu_custom_call.1} parent=1 // pred_check_branch
      %433 = sbr.rel (0) target = $region57
    $region56: #{tpu_custom_call.1} parent=1 // pred_region
      %434 = dma.done [#allocation13], 16
    $region57: #{tpu_custom_call.1} parent=1 // pred_fallthru
      _
    %435 = vsyncpa [#allocation3], 1
    %436 = vsyncpa [#allocation6], 1
    %437 = vsyncpa [#allocation9], 1
    %438 = vsyncpa [#allocation4], 1
    %439 = vsyncpa [#allocation13], 1

</llo_original>
